<compile_context>
chip_gen: v5e
topology: v5e:2x2
jax: 0.10.0
libtpu: 0.0.40
codegen_flags: <defaults>
</compile_context>

<pallas_src>
import jax
import jax.numpy as jnp
from jax.experimental import pallas as pl
from jax.experimental.pallas import tpu as pltpu


def _round_up(n, m):
    return ((n + m - 1) // m) * m


def _vmem_capacity_bytes():
    """Physical VMEM per TensorCore; conservative 64 MiB if unknown."""
    try:
        cap = int(pltpu.get_tpu_info().vmem_capacity_bytes)
        if cap > 0:
            return cap
    except Exception:
        pass
    return 64 * 1024 * 1024


# ---------------------------------------------------------------------------
# Kernels
# ---------------------------------------------------------------------------

def ffn_kernel_fused(x_ref, w1_ref, b1_ref, w2_ref, b2_ref, o_ref):
    """Whole FF dimension resident (n_f == 1): no accumulator, direct store."""
    h = jnp.dot(x_ref[...], w1_ref[...], preferred_element_type=jnp.float32)
    h = jnp.maximum(h + b1_ref[...], 0.0)          # bias + ReLU; dropout = identity (eval)
    y = jnp.dot(h.astype(w2_ref.dtype), w2_ref[...],
                preferred_element_type=jnp.float32) + b2_ref[...]
    o_ref[...] = y.astype(o_ref.dtype)


def ffn_kernel_acc(x_ref, w1_ref, b1_ref, w2_ref, b2_ref, o_ref, acc_ref):
    """F-tiled variant: grid = (row tiles [parallel], F tiles [reduction])."""
    j = pl.program_id(1)

    h = jnp.dot(x_ref[...], w1_ref[...], preferred_element_type=jnp.float32)
    h = jnp.maximum(h + b1_ref[...], 0.0)          # dropout = identity (eval)
    part = jnp.dot(h.astype(w2_ref.dtype), w2_ref[...],
                   preferred_element_type=jnp.float32)

    @pl.when(j == 0)
    def _():
        acc_ref[...] = part + b2_ref[...]          # init with first partial + bias

    @pl.when(j != 0)
    def _():
        acc_ref[...] = acc_ref[...] + part

    @pl.when(j == pl.num_programs(1) - 1)
    def _():
        o_ref[...] = acc_ref[...].astype(o_ref.dtype)


# ---------------------------------------------------------------------------
# pallas_call builder
# ---------------------------------------------------------------------------

def _build_ffn_call(Mp, Hp, Fp, tm, tf, x_dtype, w_dtype, out_dtype,
                    single_buffer_resident, vmem_cap):
    n_m, n_f = Mp // tm, Fp // tf
    x_item = jnp.dtype(x_dtype).itemsize
    w_item = jnp.dtype(w_dtype).itemsize
    o_item = jnp.dtype(out_dtype).itemsize

    # Single-buffer the big weight blocks only when their index is constant
    # over the entire grid (n_f == 1); otherwise they are genuinely pipelined.
    resident = (n_f == 1) and single_buffer_resident
    w_mode = dict(pipeline_mode=pl.Buffered(1)) if resident else {}

    if n_f == 1:
        in_specs = [
            pl.BlockSpec((tm, Hp), lambda i: (i, 0)),                 # x rows
            pl.BlockSpec((Hp, Fp), lambda i: (0, 0), **w_mode),       # W1 (resident)
            pl.BlockSpec((1, Fp), lambda i: (0, 0)),                  # b1
            pl.BlockSpec((Fp, Hp), lambda i: (0, 0), **w_mode),       # W2 (resident)
            pl.BlockSpec((1, Hp), lambda i: (0, 0)),                  # b2
        ]
        out_specs = pl.BlockSpec((tm, Hp), lambda i: (i, 0))
        kernel, grid, scratch = ffn_kernel_fused, (n_m,), []
        dims = ("parallel",)
    else:
        in_specs = [
            pl.BlockSpec((tm, Hp), lambda i, j: (i, 0)),              # x rows
            pl.BlockSpec((Hp, tf), lambda i, j: (0, j)),              # W1 slice
            pl.BlockSpec((1, tf), lambda i, j: (0, j)),               # b1 slice
            pl.BlockSpec((tf, Hp), lambda i, j: (j, 0)),              # W2 slice
            pl.BlockSpec((1, Hp), lambda i, j: (0, 0)),               # b2
        ]
        out_specs = pl.BlockSpec((tm, Hp), lambda i, j: (i, 0))
        kernel, grid = ffn_kernel_acc, (n_m, n_f)
        scratch = [pltpu.VMEM((tm, Hp), jnp.float32)]
        dims = ("parallel", "arbitrary")

    # VMEM budget for this exact configuration.
    w_bufs = 1 if resident else 2
    est = (w_bufs * 2 * Hp * tf * w_item              # W1 + W2 slices
           + 2 * (tf + Hp) * 4                        # biases (f32)
           + 2 * tm * Hp * (x_item + o_item)          # x / out tiles (double-buffered)
           + (tm * Hp * 4 if n_f > 1 else 0)          # f32 accumulator scratch
           + tm * tf * (4 + w_item))                  # f32 h + cast copy
    usable = vmem_cap - (8 << 20)                     # headroom for internal scratch
    vmem_limit = int(min(usable, max(32 << 20, int(1.25 * est))))

    flops = 4 * Mp * Hp * Fp                          # two (Mp,Hp,Fp)-sized matmuls
    bytes_accessed = (Mp * Hp * (x_item + o_item)
                      + (n_m if n_f > 1 else 1) * 2 * Hp * Fp * w_item
                      + (Fp + Hp) * 4)

    return pl.pallas_call(
        kernel,
        out_shape=jax.ShapeDtypeStruct((Mp, Hp), out_dtype),
        grid_spec=pltpu.PrefetchScalarGridSpec(
            num_scalar_prefetch=0,
            grid=grid,
            in_specs=in_specs,
            out_specs=out_specs,
            scratch_shapes=scratch,
        ),
        compiler_params=pltpu.CompilerParams(
            dimension_semantics=dims,
            vmem_limit_bytes=vmem_limit),
        cost_estimate=pl.CostEstimate(flops=flops, transcendentals=0,
                                      bytes_accessed=bytes_accessed),
    )


# ---------------------------------------------------------------------------
# Tiling heuristics
# ---------------------------------------------------------------------------

def _choose_tiles(M, Hp, Fp, x_item, w_item, out_item, tm_req, tf_req, vmem_cap):
    usable = vmem_cap - (8 << 20)
    small_vmem = vmem_cap <= (80 << 20)               # v7x-class (64 MiB, 2 TCs)

    # ---- F tile ------------------------------------------------------------
    if tf_req is not None:
        tf = min(_round_up(int(tf_req), 128), Fp)
        while Fp % tf != 0:                           # largest 128-aligned divisor <= request
            tf -= 128
    else:
        # Full residency: W1+W2 DMA'd exactly once, single-buffered via Buffered(1).
        resident_thresh = (12 << 20) if small_vmem else (40 << 20)
        if 2 * Hp * Fp * w_item <= resident_thresh:
            tf = Fp
        else:
            # F-tiled: double-buffered W1+W2 slices must fit the slice budget.
            slice_budget = (20 << 20) if small_vmem else (48 << 20)
            tf = Fp
            while tf % 256 == 0 and 4 * Hp * tf * w_item > slice_budget:
                tf //= 2

    # ---- row tile (keep it large; MXU fill + step-overhead amortization) ----
    sub = 16 if x_item == 2 else 8                    # sublane pack (bf16 / f32)
    tm = 512 if tm_req is None else max(int(tm_req), sub)
    tm = _round_up(tm, sub)
    tm = min(tm, _round_up(M, sub))
    # v7x-class: keep >= 2 row tiles so the "parallel" axis spans both TensorCores.
    if small_vmem and _round_up(M, sub) <= tm and M >= 512:
        tm = _round_up((M + 1) // 2, 256)

    # ---- fit into VMEM: shrink tf first, shrink tm only as a last resort ----
    def _est(tm_, tf_):
        n_f_ = Fp // tf_
        return (4 * Hp * tf_ * w_item                  # worst-case double-buffered W1+W2
                + 2 * (tf_ + Hp) * 4
                + 2 * tm_ * Hp * (x_item + out_item)
                + (tm_ * Hp * 4 if n_f_ > 1 else 0)
                + tm_ * tf_ * (4 + w_item))

    budget = int(usable * 0.9)
    while _est(tm, tf) > budget:
        if tf % 256 == 0:                              # halving keeps 128-alignment + divisibility
            tf //= 2
        elif tm > sub:
            tm = _round_up(max(tm // 2, sub), sub)
        else:
            break
    return tm, tf


# ---------------------------------------------------------------------------
# Public API
# ---------------------------------------------------------------------------

def prepare_ffn_params(w1, b1, w2, b2, *, compute_dtype=None):
    """Pad (and optionally cast) the Linear weights ONCE, outside the per-call path.

    w1: (H, F), b1: (F,), w2: (F, H), b2: (H,) — stored transposed relative to
    torch.nn.Linear so the kernel computes plain row-major matmuls.
    Biases stay f32 (they meet the f32 accumulator inside the kernel).
    """
    H, F = w1.shape
    Hp = _round_up(H, 128)
    Fp = _round_up(F, 128)
    wd = compute_dtype if compute_dtype is not None else w1.dtype
    w1p = jnp.pad(w1.astype(wd), ((0, Hp - H), (0, Fp - F)))
    w2p = jnp.pad(w2.astype(wd), ((0, Fp - F), (0, Hp - H)))
    b1p = jnp.pad(b1.astype(jnp.float32).reshape(1, F), ((0, 0), (0, Fp - F)))
    b2p = jnp.pad(b2.astype(jnp.float32).reshape(1, H), ((0, 0), (0, Hp - H)))
    return dict(w1=w1p, b1=b1p, w2=w2p, b2=b2p, H=H, F=F, Hp=Hp, Fp=Fp,
                compute_dtype=compute_dtype)


def ffn_forward(x, params, *, tm=None, tf=None):
    """x: (B, S, H) -> (B, S, H).  Eval-mode FFN: Linear -> ReLU -> (dropout=id) -> Linear."""
    orig_dtype = x.dtype
    B, S, H = x.shape
    assert H == params["H"], "hidden size mismatch with prepared params"
    Hp, Fp = params["Hp"], params["Fp"]
    M = B * S

    cdt = params["compute_dtype"]
    if cdt is not None:
        x = x.astype(cdt)
    out_dtype = x.dtype

    vmem_cap = _vmem_capacity_bytes()
    x_item = jnp.dtype(x.dtype).itemsize
    w_item = jnp.dtype(params["w1"].dtype).itemsize
    o_item = jnp.dtype(out_dtype).itemsize
    tm_, tf_ = _choose_tiles(M, Hp, Fp, x_item, w_item, o_item, tm, tf, vmem_cap)

    # Only x is padded per call; zero padding leaves the valid region's math unchanged.
    Mp = _round_up(M, tm_)
    x2d = jnp.pad(x.reshape(M, H), ((0, Mp - M), (0, Hp - H)))
    args = (x2d, params["w1"], params["b1"], params["w2"], params["b2"])

    try:
        call = _build_ffn_call(Mp, Hp, Fp, tm_, tf_, x2d.dtype,
                               params["w1"].dtype, out_dtype,
                               single_buffer_resident=True, vmem_cap=vmem_cap)
        out2d = call(*args)
    except Exception:
        # Narrow fallback: only covers jax versions where Buffered(1) resident
        # operands fail to lower (n_f == 1 path).  The retry budget respects
        # the physical VMEM cap, so it cannot silently over-subscribe v7x.
        if Fp // tf_ != 1:
            raise
        call = _build_ffn_call(Mp, Hp, Fp, tm_, tf_, x2d.dtype,
                               params["w1"].dtype, out_dtype,
                               single_buffer_resident=False, vmem_cap=vmem_cap)
        out2d = call(*args)

    return out2d[:M, :H].reshape(B, S, H).astype(orig_dtype)


def init_params(key, hidden, ff, dtype=jnp.float32):
    """Deterministic xavier-uniform-like init for the two Linear layers."""
    k1, k2 = jax.random.split(key)
    lim1 = (6.0 / (hidden + ff)) ** 0.5
    lim2 = (6.0 / (ff + hidden)) ** 0.5
    w1 = jax.random.uniform(k1, (hidden, ff), dtype, minval=-lim1, maxval=lim1)
    w2 = jax.random.uniform(k2, (ff, hidden), dtype, minval=-lim2, maxval=lim2)
    b1 = jnp.zeros((ff,), dtype)
    b2 = jnp.zeros((hidden,), dtype)
    return w1, b1, w2, b2


if __name__ == "__main__":
    # Small config consistent with the module: HIDDEN_SIZE=32, FF_SIZE=4*32=128
    B, S, HIDDEN, FF = 2, 8, 32, 128
    key = jax.random.PRNGKey(0)
    kx, kp = jax.random.split(key)

    x = jax.random.normal(kx, (B, S, HIDDEN), jnp.float32)
    w1, b1, w2, b2 = init_params(kp, HIDDEN, FF)

    params = prepare_ffn_params(w1, b1, w2, b2)        # pad once, outside the hot path
    out = jax.block_until_ready(ffn_forward(x, params))

    ref = (jnp.maximum(x.reshape(-1, HIDDEN) @ w1 + b1, 0.0) @ w2 + b2)
    ref = ref.reshape(B, S, HIDDEN)
    assert out.shape == (B, S, HIDDEN)
    assert jnp.allclose(out, ref, atol=1e-5, rtol=1e-5)

    # Exercise the bf16 + F-tiled accumulator path at a more realistic shape.
    Hr, Fr = 256, 1024
    xr = jax.random.normal(kx, (4, 64, Hr), jnp.float32)
    w1r, b1r, w2r, b2r = init_params(kp, Hr, Fr)
    paramsr = prepare_ffn_params(w1r, b1r, w2r, b2r, compute_dtype=jnp.bfloat16)
    outr = jax.block_until_ready(ffn_forward(xr, paramsr, tf=512))
    refr = (jnp.maximum(xr.reshape(-1, Hr) @ w1r + b1r, 0.0) @ w2r + b2r)
    refr = refr.reshape(4, 64, Hr)
    err = outr.astype(jnp.float32) - refr
    rel_err = jnp.sqrt(jnp.sum(err * err) / jnp.sum(refr * refr))
    assert rel_err < 0.03

    print("KERNEL_OK")
</pallas_src>

<mosaic_0001>
module attributes {stable_mosaic.version = 11 : i64} {
  func.func @ffn_kernel_fused(%arg0: i32, %arg1: memref<16x128xf32, #tpu.memory_space<vmem>>, %arg2: memref<128x128xf32, #tpu.memory_space<vmem>>, %arg3: memref<1x128xf32, #tpu.memory_space<vmem>>, %arg4: memref<128x128xf32, #tpu.memory_space<vmem>>, %arg5: memref<1x128xf32, #tpu.memory_space<vmem>>, %arg6: memref<16x128xf32, #tpu.memory_space<vmem>>) attributes {dimension_semantics = [#tpu.dimension_semantics<parallel>], iteration_bounds = array<i64: 1>, scalar_prefetch = 0 : i64, scratch_operands = 0 : i64, tpu.core_type = #tpu.core_type<tc>, window_params = [{transform_indices = @transform_0, window_bounds = array<i64: 16, 128>}, {pipeline_mode = #tpu.pipeline_mode<synchronous>, transform_indices = @transform_1, window_bounds = array<i64: 128, 128>}, {pipeline_mode = #tpu.pipeline_mode<synchronous>, transform_indices = @transform_2, window_bounds = array<i64: 1, 128>}, {pipeline_mode = #tpu.pipeline_mode<synchronous>, transform_indices = @transform_3, window_bounds = array<i64: 128, 128>}, {pipeline_mode = #tpu.pipeline_mode<synchronous>, transform_indices = @transform_4, window_bounds = array<i64: 1, 128>}, {transform_indices = @transform_5, window_bounds = array<i64: 16, 128>}]} {
    %c0 = arith.constant 0 : index
    %c0_0 = arith.constant 0 : index
    %0 = vector.load %arg1[%c0, %c0_0] : memref<16x128xf32, #tpu.memory_space<vmem>>, vector<16x128xf32>
    %c0_1 = arith.constant 0 : index
    %c0_2 = arith.constant 0 : index
    %1 = vector.load %arg2[%c0_1, %c0_2] : memref<128x128xf32, #tpu.memory_space<vmem>>, vector<128x128xf32>
    %cst = arith.constant dense<0.000000e+00> : vector<16x128xf32>
    %2 = tpu.matmul %0, %1, %cst {dimension_numbers = #tpu.dot_dimension_numbers<[1], [0], [0], [1], [0, 0, 1, 1], [], []>} : vector<16x128xf32>, vector<128x128xf32>, vector<16x128xf32> -> vector<16x128xf32>
    %c0_3 = arith.constant 0 : index
    %c0_4 = arith.constant 0 : index
    %3 = vector.load %arg3[%c0_3, %c0_4] : memref<1x128xf32, #tpu.memory_space<vmem>>, vector<1x128xf32>
    %4 = vector.broadcast %3 : vector<1x128xf32> to vector<16x128xf32>
    %5 = arith.addf %2, %4 : vector<16x128xf32>
    %cst_5 = arith.constant 0.000000e+00 : f32
    %6 = vector.broadcast %cst_5 : f32 to vector<16x128xf32>
    %7 = arith.maximumf %5, %6 : vector<16x128xf32>
    %c0_6 = arith.constant 0 : index
    %c0_7 = arith.constant 0 : index
    %8 = vector.load %arg4[%c0_6, %c0_7] : memref<128x128xf32, #tpu.memory_space<vmem>>, vector<128x128xf32>
    %cst_8 = arith.constant dense<0.000000e+00> : vector<16x128xf32>
    %9 = tpu.matmul %7, %8, %cst_8 {dimension_numbers = #tpu.dot_dimension_numbers<[1], [0], [0], [1], [0, 0, 1, 1], [], []>} : vector<16x128xf32>, vector<128x128xf32>, vector<16x128xf32> -> vector<16x128xf32>
    %c0_9 = arith.constant 0 : index
    %c0_10 = arith.constant 0 : index
    %10 = vector.load %arg5[%c0_9, %c0_10] : memref<1x128xf32, #tpu.memory_space<vmem>>, vector<1x128xf32>
    %11 = vector.broadcast %10 : vector<1x128xf32> to vector<16x128xf32>
    %12 = arith.addf %9, %11 : vector<16x128xf32>
    %c0_11 = arith.constant 0 : index
    %c0_12 = arith.constant 0 : index
    %13 = vector.load %arg6[%c0_11, %c0_12] : memref<16x128xf32, #tpu.memory_space<vmem>>, vector<16x128xf32>
    tpu.vector_store %arg6[%c0_11, %c0_12], %12 {strides = array<i32>} : memref<16x128xf32, #tpu.memory_space<vmem>>, vector<16x128xf32>,
    return
  }
  func.func @transform_0(%arg0: i32) -> (i32, i32) {
    %c0_i32 = arith.constant 0 : i32
    %c0_i32_0 = arith.constant 0 : i32
    return %arg0, %c0_i32 : i32, i32
  }
  func.func @transform_1(%arg0: i32) -> (i32, i32) {
    %c0_i32 = arith.constant 0 : i32
    %c0_i32_0 = arith.constant 0 : i32
    %c0_i32_1 = arith.constant 0 : i32
    return %c0_i32, %c0_i32_0 : i32, i32
  }
  func.func @transform_2(%arg0: i32) -> (i32, i32) {
    %c0_i32 = arith.constant 0 : i32
    %c0_i32_0 = arith.constant 0 : i32
    %c0_i32_1 = arith.constant 0 : i32
    return %c0_i32, %c0_i32_0 : i32, i32
  }
  func.func @transform_3(%arg0: i32) -> (i32, i32) {
    %c0_i32 = arith.constant 0 : i32
    %c0_i32_0 = arith.constant 0 : i32
    %c0_i32_1 = arith.constant 0 : i32
    return %c0_i32, %c0_i32_0 : i32, i32
  }
  func.func @transform_4(%arg0: i32) -> (i32, i32) {
    %c0_i32 = arith.constant 0 : i32
    %c0_i32_0 = arith.constant 0 : i32
    %c0_i32_1 = arith.constant 0 : i32
    return %c0_i32, %c0_i32_0 : i32, i32
  }
  func.func @transform_5(%arg0: i32) -> (i32, i32) {
    %c0_i32 = arith.constant 0 : i32
    %c0_i32_0 = arith.constant 0 : i32
    return %arg0, %c0_i32 : i32, i32
  }
}

module attributes {stable_mosaic.version = 11 : i64} {
  func.func @ffn_kernel_fused(%arg0: i32, %arg1: memref<16x128xf32, #tpu.memory_space<vmem>>, %arg2: memref<128x128xf32, #tpu.memory_space<vmem>>, %arg3: memref<1x128xf32, #tpu.memory_space<vmem>>, %arg4: memref<128x128xf32, #tpu.memory_space<vmem>>, %arg5: memref<1x128xf32, #tpu.memory_space<vmem>>, %arg6: memref<16x128xf32, #tpu.memory_space<vmem>>) attributes {dimension_semantics = [#tpu.dimension_semantics<parallel>], iteration_bounds = array<i64: 1>, scalar_prefetch = 0 : i64, scratch_operands = 0 : i64, tpu.core_type = #tpu.core_type<tc>, window_params = [{transform_indices = @transform_0, window_bounds = array<i64: 16, 128>}, {pipeline_mode = #tpu.pipeline_mode<synchronous>, transform_indices = @transform_1, window_bounds = array<i64: 128, 128>}, {pipeline_mode = #tpu.pipeline_mode<synchronous>, transform_indices = @transform_2, window_bounds = array<i64: 1, 128>}, {pipeline_mode = #tpu.pipeline_mode<synchronous>, transform_indices = @transform_3, window_bounds = array<i64: 128, 128>}, {pipeline_mode = #tpu.pipeline_mode<synchronous>, transform_indices = @transform_4, window_bounds = array<i64: 1, 128>}, {transform_indices = @transform_5, window_bounds = array<i64: 16, 128>}]} {
    %c0 = arith.constant 0 : index
    %c0_0 = arith.constant 0 : index
    %0 = vector.load %arg1[%c0, %c0_0] : memref<16x128xf32, #tpu.memory_space<vmem>>, vector<16x128xf32>
    %c0_1 = arith.constant 0 : index
    %c0_2 = arith.constant 0 : index
    %1 = vector.load %arg2[%c0_1, %c0_2] : memref<128x128xf32, #tpu.memory_space<vmem>>, vector<128x128xf32>
    %cst = arith.constant dense<0.000000e+00> : vector<16x128xf32>
    %2 = tpu.matmul %0, %1, %cst {dimension_numbers = #tpu.dot_dimension_numbers<[1], [0], [0], [1], [0, 0, 1, 1], [], []>} : vector<16x128xf32>, vector<128x128xf32>, vector<16x128xf32> -> vector<16x128xf32>
    %c0_3 = arith.constant 0 : index
    %c0_4 = arith.constant 0 : index
    %3 = vector.load %arg3[%c0_3, %c0_4] : memref<1x128xf32, #tpu.memory_space<vmem>>, vector<1x128xf32>
    %4 = vector.broadcast %3 : vector<1x128xf32> to vector<16x128xf32>
    %5 = arith.addf %2, %4 : vector<16x128xf32>
    %cst_5 = arith.constant 0.000000e+00 : f32
    %6 = vector.broadcast %cst_5 : f32 to vector<16x128xf32>
    %7 = arith.maximumf %5, %6 : vector<16x128xf32>
    %c0_6 = arith.constant 0 : index
    %c0_7 = arith.constant 0 : index
    %8 = vector.load %arg4[%c0_6, %c0_7] : memref<128x128xf32, #tpu.memory_space<vmem>>, vector<128x128xf32>
    %cst_8 = arith.constant dense<0.000000e+00> : vector<16x128xf32>
    %9 = tpu.matmul %7, %8, %cst_8 {dimension_numbers = #tpu.dot_dimension_numbers<[1], [0], [0], [1], [0, 0, 1, 1], [], []>} : vector<16x128xf32>, vector<128x128xf32>, vector<16x128xf32> -> vector<16x128xf32>
    %c0_9 = arith.constant 0 : index
    %c0_10 = arith.constant 0 : index
    %10 = vector.load %arg5[%c0_9, %c0_10] : memref<1x128xf32, #tpu.memory_space<vmem>>, vector<1x128xf32>
    %11 = vector.broadcast %10 : vector<1x128xf32> to vector<16x128xf32>
    %12 = arith.addf %9, %11 : vector<16x128xf32>
    %c0_11 = arith.constant 0 : index
    %c0_12 = arith.constant 0 : index
    %13 = vector.load %arg6[%c0_11, %c0_12] : memref<16x128xf32, #tpu.memory_space<vmem>>, vector<16x128xf32>
    tpu.vector_store %arg6[%c0_11, %c0_12], %12 {strides = array<i32>} : memref<16x128xf32, #tpu.memory_space<vmem>>, vector<16x128xf32>,
    return
  }
  func.func @transform_0(%arg0: i32) -> (i32, i32) {
    %c0_i32 = arith.constant 0 : i32
    %c0_i32_0 = arith.constant 0 : i32
    return %arg0, %c0_i32 : i32, i32
  }
  func.func @transform_1(%arg0: i32) -> (i32, i32) {
    %c0_i32 = arith.constant 0 : i32
    %c0_i32_0 = arith.constant 0 : i32
    %c0_i32_1 = arith.constant 0 : i32
    return %c0_i32, %c0_i32_0 : i32, i32
  }
  func.func @transform_2(%arg0: i32) -> (i32, i32) {
    %c0_i32 = arith.constant 0 : i32
    %c0_i32_0 = arith.constant 0 : i32
    %c0_i32_1 = arith.constant 0 : i32
    return %c0_i32, %c0_i32_0 : i32, i32
  }
  func.func @transform_3(%arg0: i32) -> (i32, i32) {
    %c0_i32 = arith.constant 0 : i32
    %c0_i32_0 = arith.constant 0 : i32
    %c0_i32_1 = arith.constant 0 : i32
    return %c0_i32, %c0_i32_0 : i32, i32
  }
  func.func @transform_4(%arg0: i32) -> (i32, i32) {
    %c0_i32 = arith.constant 0 : i32
    %c0_i32_0 = arith.constant 0 : i32
    %c0_i32_1 = arith.constant 0 : i32
    return %c0_i32, %c0_i32_0 : i32, i32
  }
  func.func @transform_5(%arg0: i32) -> (i32, i32) {
    %c0_i32 = arith.constant 0 : i32
    %c0_i32_0 = arith.constant 0 : i32
    return %arg0, %c0_i32 : i32, i32
  }
}

</mosaic_0001>

<llo_original>
// kernel: tpu_custom_call.1
$region0: #{tpu_custom_call.1}
  #allocation0 [shape = 'u32[]', space=smem, size = 0x4, offset = 0x4, fixed_abs, tag = 'smem constant byte address 0x4 - core index']
  #allocation1 [shape = 'u32[72,128]{1,0:T(1,128)}', space=vmem, size = 0x9000, scoped, tag = 'internal scratch']
  %s0 = inlined_call_operand.hbm [shape: f32[16,128], index: 0, kind: input, shape index: {}]
  %s1 = inlined_call_operand.hbm [shape: f32[128,128], index: 1, kind: input, shape index: {}]
  %s2 = inlined_call_operand.vmem [shape: f32[1,128], index: 2, kind: input, shape index: {}]
  %s3 = inlined_call_operand.hbm [shape: f32[128,128], index: 3, kind: input, shape index: {}]
  %s4 = inlined_call_operand.vmem [shape: f32[1,128], index: 4, kind: input, shape index: {}]
  %s5 = inlined_call_operand.hbm [shape: f32[16,128], index: 5, kind: output, shape index: {}]
  %s6 = sld [smem:[#allocation0]]
  $region42: #{tpu_custom_call.1} parent=0
    _
  %s8 = ssub.s32 1, %s6
  %s9 = scalar_select 0, %s8, %s6
  $region1: #{tpu_custom_call.1} parent=0
    #allocation2 [shape = 'u8[8192]{0}', space=vmem, size = 0x2000, scoped, tag = 'input window, operand 0, single buffered']
    #allocation3 [shape = 's32[1]{0}', space=sflag, size = 0x4, scoped, tag = 'scoped memory for tpu_custom_call.1']
    #allocation4 [shape = 's32[1]{0}', space=sflag, size = 0x4, scoped, tag = 'scoped memory for tpu_custom_call.1']
    #allocation5 [shape = 'u8[65536]{0}', space=vmem, size = 0x10000, scoped, tag = 'input window, operand 1, single buffered']
    #allocation6 [shape = 's32[1]{0}', space=sflag, size = 0x4, scoped, tag = 'scoped memory for tpu_custom_call.1']
    #allocation7 [shape = 'u8[65536]{0}', space=vmem, size = 0x10000, scoped, tag = 'input window, operand 3, single buffered']
    #allocation8 [shape = 'u8[8192]{0}', space=vmem, size = 0x2000, scoped, tag = 'output window, operand 0, single buffered']
    %10 = vsyncpa [#allocation3], 0
    %11 = vsyncpa [#allocation6], 0
    %12 = vsyncpa [#allocation4], 0
    // Predicated region
    $region2: #{tpu_custom_call.1} parent=1 // pred_check
      _
    $region3: #{tpu_custom_call.1} parent=1 // pred_check_branch
      %14 = sbr.rel (0) target = $region5
    $region4: #{tpu_custom_call.1} parent=1 // pred_region
      %16 = vsyncadd [#allocation3], 0
      %s17 = sshll.u32 %s0, 4
      %s18 = int_to_ptr.hbm [resolvable:$true] %s17
      %s19 = sshll.u32 [#allocation2], 4
      %s20 = int_to_ptr.vmem [resolvable:$true] %s19
      %25 = dma.hbm_to_vmem [thread:$0]  %s18, 256, %s20, [#allocation3], 128, 128, 8
    $region5: #{tpu_custom_call.1} parent=1 // pred_fallthru
      _
    // Predicated region
    $region6: #{tpu_custom_call.1} parent=1 // pred_check
      _
    $region7: #{tpu_custom_call.1} parent=1 // pred_check_branch
      %27 = sbr.rel (0) target = $region9
    $region8: #{tpu_custom_call.1} parent=1 // pred_region
      %29 = vsyncadd [#allocation6], 0
      %s30 = sshll.u32 %s1, 4
      %s31 = int_to_ptr.hbm [resolvable:$true] %s30
      %s32 = sshll.u32 [#allocation5], 4
      %s33 = int_to_ptr.vmem [resolvable:$true] %s32
      %38 = dma.hbm_to_vmem [thread:$0]  %s31, 2048, %s33, [#allocation6], 128, 128, 8
    $region9: #{tpu_custom_call.1} parent=1 // pred_fallthru
      _
    // Predicated region
    $region10: #{tpu_custom_call.1} parent=1 // pred_check
      _
    $region11: #{tpu_custom_call.1} parent=1 // pred_check_branch
      %40 = sbr.rel (0) target = $region13
    $region12: #{tpu_custom_call.1} parent=1 // pred_region
      _
    $region13: #{tpu_custom_call.1} parent=1 // pred_fallthru
      _
    // Predicated region
    $region14: #{tpu_custom_call.1} parent=1 // pred_check
      _
    $region15: #{tpu_custom_call.1} parent=1 // pred_check_branch
      %42 = sbr.rel (0) target = $region17
    $region16: #{tpu_custom_call.1} parent=1 // pred_region
      %44 = vsyncadd [#allocation6], 0
      %s45 = sshll.u32 %s3, 4
      %s46 = int_to_ptr.hbm [resolvable:$true] %s45
      %s47 = sshll.u32 [#allocation7], 4
      %s48 = int_to_ptr.vmem [resolvable:$true] %s47
      %53 = dma.hbm_to_vmem [thread:$0]  %s46, 2048, %s48, [#allocation6], 128, 128, 8
    $region17: #{tpu_custom_call.1} parent=1 // pred_fallthru
      _
    // Predicated region
    $region18: #{tpu_custom_call.1} parent=1 // pred_check
      _
    $region19: #{tpu_custom_call.1} parent=1 // pred_check_branch
      %55 = sbr.rel (0) target = $region21
    $region20: #{tpu_custom_call.1} parent=1 // pred_region
      _
    $region21: #{tpu_custom_call.1} parent=1 // pred_fallthru
      _
    // Predicated region
    $region22: #{tpu_custom_call.1} parent=1 // pred_check
      _
    $region23: #{tpu_custom_call.1} parent=1 // pred_check_branch
      %57 = sbr.rel (0) target = $region25
    $region24: #{tpu_custom_call.1} parent=1 // pred_region
      %59 = dma.done [#allocation3], 256
    $region25: #{tpu_custom_call.1} parent=1 // pred_fallthru
      _
    // Predicated region
    $region26: #{tpu_custom_call.1} parent=1 // pred_check
      _
    $region27: #{tpu_custom_call.1} parent=1 // pred_check_branch
      %61 = sbr.rel (0) target = $region29
    $region28: #{tpu_custom_call.1} parent=1 // pred_region
      %63 = dma.done [#allocation6], 2048
    $region29: #{tpu_custom_call.1} parent=1 // pred_fallthru
      _
    // Predicated region
    $region30: #{tpu_custom_call.1} parent=1 // pred_check
      _
    $region31: #{tpu_custom_call.1} parent=1 // pred_check_branch
      %65 = sbr.rel (0) target = $region33
    $region32: #{tpu_custom_call.1} parent=1 // pred_region
      %67 = dma.done [#allocation6], 2048
    $region33: #{tpu_custom_call.1} parent=1 // pred_fallthru
      _
    %v68 = vld [vmem:[#allocation2] sm:$0xff]
    %v69 = vld [vmem:[#allocation2 + $0x8] sm:$0xff]
    %v70 = vld [vmem:[#allocation5] sm:$0xff]
    %v71 = vld [vmem:[#allocation5 + $0x8] sm:$0xff]
    %v72 = vld [vmem:[#allocation5 + $0x10] sm:$0xff]
    %v73 = vld [vmem:[#allocation5 + $0x18] sm:$0xff]
    %v74 = vld [vmem:[#allocation5 + $0x20] sm:$0xff]
    %v75 = vld [vmem:[#allocation5 + $0x28] sm:$0xff]
    %v76 = vld [vmem:[#allocation5 + $0x30] sm:$0xff]
    %v77 = vld [vmem:[#allocation5 + $0x38] sm:$0xff]
    %v78 = vld [vmem:[#allocation5 + $0x40] sm:$0xff]
    %v79 = vld [vmem:[#allocation5 + $0x48] sm:$0xff]
    %v80 = vld [vmem:[#allocation5 + $0x50] sm:$0xff]
    %v81 = vld [vmem:[#allocation5 + $0x58] sm:$0xff]
    %v82 = vld [vmem:[#allocation5 + $0x60] sm:$0xff]
    %v83 = vld [vmem:[#allocation5 + $0x68] sm:$0xff]
    %v84 = vld [vmem:[#allocation5 + $0x70] sm:$0xff]
    %v85 = vld [vmem:[#allocation5 + $0x78] sm:$0xff]
    %v86 = vld [vmem:[%s2] sm:$0x1]
    %v88 = vperm.slane %v86, 0
    %90 = vmatpush.msra.mxu0 %v85
    %91 = vmatpush.msra.mxu0 %v84
    %92 = vmatpush.msra.mxu0 %v83
    %93 = vmatpush.msra.mxu0 %v82
    %94 = vmatpush.msra.mxu0 %v81
    %95 = vmatpush.msra.mxu0 %v80
    %96 = vmatpush.msra.mxu0 %v79
    %97 = vmatpush.msra.mxu0 %v78
    %98 = vmatpush.msra.mxu0 %v77
    %99 = vmatpush.msra.mxu0 %v76
    %100 = vmatpush.msra.mxu0 %v75
    %101 = vmatpush.msra.mxu0 %v74
    %102 = vmatpush.msra.mxu0 %v73
    %103 = vmatpush.msra.mxu0 %v72
    %104 = vmatpush.msra.mxu0 %v71
    %105 = vmatpush.msra.mxu0 %v70
    %106 = vmatmul.f32.gmra.mxu0 %v68
    %v107 = vpop.f32.mrf.mxu0
    %v108 = vadd.f32 %v88, %v107
    %109 = vmatmul.f32.gmra.mxu0 %v69
    %v110 = vpop.f32.mrf.mxu0
    %v111 = vadd.f32 %v88, %v110
    %112 = vdwg.mxu0
    %v113 = vmax.f32 %v108, 0.0
    %v114 = vmax.f32 %v111, 0.0
    %v115 = vld [vmem:[#allocation7] sm:$0xff]
    %v116 = vld [vmem:[#allocation7 + $0x8] sm:$0xff]
    %v117 = vld [vmem:[#allocation7 + $0x10] sm:$0xff]
    %v118 = vld [vmem:[#allocation7 + $0x18] sm:$0xff]
    %v119 = vld [vmem:[#allocation7 + $0x20] sm:$0xff]
    %v120 = vld [vmem:[#allocation7 + $0x28] sm:$0xff]
    %v121 = vld [vmem:[#allocation7 + $0x30] sm:$0xff]
    %v122 = vld [vmem:[#allocation7 + $0x38] sm:$0xff]
    %v123 = vld [vmem:[#allocation7 + $0x40] sm:$0xff]
    %v124 = vld [vmem:[#allocation7 + $0x48] sm:$0xff]
    %v125 = vld [vmem:[#allocation7 + $0x50] sm:$0xff]
    %v126 = vld [vmem:[#allocation7 + $0x58] sm:$0xff]
    %v127 = vld [vmem:[#allocation7 + $0x60] sm:$0xff]
    %v128 = vld [vmem:[#allocation7 + $0x68] sm:$0xff]
    %v129 = vld [vmem:[#allocation7 + $0x70] sm:$0xff]
    %v130 = vld [vmem:[#allocation7 + $0x78] sm:$0xff]
    %v131 = vld [vmem:[%s4] sm:$0x1]
    %v133 = vperm.slane %v131, 0
    %135 = vmatpush.msra.mxu0 %v130
    %136 = vmatpush.msra.mxu0 %v129
    %137 = vmatpush.msra.mxu0 %v128
    %138 = vmatpush.msra.mxu0 %v127
    %139 = vmatpush.msra.mxu0 %v126
    %140 = vmatpush.msra.mxu0 %v125
    %141 = vmatpush.msra.mxu0 %v124
    %142 = vmatpush.msra.mxu0 %v123
    %143 = vmatpush.msra.mxu0 %v122
    %144 = vmatpush.msra.mxu0 %v121
    %145 = vmatpush.msra.mxu0 %v120
    %146 = vmatpush.msra.mxu0 %v119
    %147 = vmatpush.msra.mxu0 %v118
    %148 = vmatpush.msra.mxu0 %v117
    %149 = vmatpush.msra.mxu0 %v116
    %150 = vmatpush.msra.mxu0 %v115
    %151 = vmatmul.f32.gmra.mxu0 %v113
    %v152 = vpop.f32.mrf.mxu0
    %v153 = vadd.f32 %v133, %v152
    %154 = vmatmul.f32.gmra.mxu0 %v114
    %v155 = vpop.f32.mrf.mxu0
    %v156 = vadd.f32 %v133, %v155
    %157 = vdwg.mxu0
    %158 = vst [vmem:[#allocation8] sm:$0xff] %v153
    %159 = vst [vmem:[#allocation8 + $0x8] sm:$0xff] %v156
    // Predicated region
    $region34: #{tpu_custom_call.1} parent=1 // pred_check
      _
    $region35: #{tpu_custom_call.1} parent=1 // pred_check_branch
      %161 = sbr.rel (0) target = $region37
    $region36: #{tpu_custom_call.1} parent=1 // pred_region
      %163 = vsyncadd [#allocation4], 0
      %s164 = sshll.u32 [#allocation8], 4
      %s165 = int_to_ptr.vmem [resolvable:$true] %s164
      %s166 = sshll.u32 %s5, 4
      %s167 = int_to_ptr.hbm [resolvable:$true] %s166
      %172 = dma.vmem_to_hbm [thread:$0]  %s165, 256, %s167, [#allocation4], 128, 128, 8
    $region37: #{tpu_custom_call.1} parent=1 // pred_fallthru
      _
    // Predicated region
    $region38: #{tpu_custom_call.1} parent=1 // pred_check
      _
    $region39: #{tpu_custom_call.1} parent=1 // pred_check_branch
      %174 = sbr.rel (0) target = $region41
    $region40: #{tpu_custom_call.1} parent=1 // pred_region
      %176 = dma.done [#allocation4], 256
    $region41: #{tpu_custom_call.1} parent=1 // pred_fallthru
      _
    %177 = vsyncpa [#allocation3], 1
    %178 = vsyncpa [#allocation6], 1
    %179 = vsyncpa [#allocation4], 1

// kernel: tpu_custom_call.1
$region0: #{tpu_custom_call.1}
  #allocation0 [shape = 'u32[]', space=smem, size = 0x4, offset = 0x4, fixed_abs, tag = 'smem constant byte address 0x4 - core index']
  #allocation1 [shape = 'u32[72,128]{1,0:T(1,128)}', space=vmem, size = 0x9000, scoped, tag = 'internal scratch']
  %s0 = inlined_call_operand.hbm [shape: f32[16,128], index: 0, kind: input, shape index: {}]
  %s1 = inlined_call_operand.hbm [shape: f32[128,128], index: 1, kind: input, shape index: {}]
  %s2 = inlined_call_operand.vmem [shape: f32[1,128], index: 2, kind: input, shape index: {}]
  %s3 = inlined_call_operand.hbm [shape: f32[128,128], index: 3, kind: input, shape index: {}]
  %s4 = inlined_call_operand.vmem [shape: f32[1,128], index: 4, kind: input, shape index: {}]
  %s5 = inlined_call_operand.hbm [shape: f32[16,128], index: 5, kind: output, shape index: {}]
  %s6 = sld [smem:[#allocation0]]
  $region42: #{tpu_custom_call.1} parent=0
    _
  %s8 = ssub.s32 1, %s6
  %s9 = scalar_select 0, %s8, %s6
  $region1: #{tpu_custom_call.1} parent=0
    #allocation2 [shape = 'u8[8192]{0}', space=vmem, size = 0x2000, scoped, tag = 'input window, operand 0, single buffered']
    #allocation3 [shape = 's32[1]{0}', space=sflag, size = 0x4, scoped, tag = 'scoped memory for tpu_custom_call.1']
    #allocation4 [shape = 's32[1]{0}', space=sflag, size = 0x4, scoped, tag = 'scoped memory for tpu_custom_call.1']
    #allocation5 [shape = 'u8[65536]{0}', space=vmem, size = 0x10000, scoped, tag = 'input window, operand 1, single buffered']
    #allocation6 [shape = 's32[1]{0}', space=sflag, size = 0x4, scoped, tag = 'scoped memory for tpu_custom_call.1']
    #allocation7 [shape = 'u8[65536]{0}', space=vmem, size = 0x10000, scoped, tag = 'input window, operand 3, single buffered']
    #allocation8 [shape = 'u8[8192]{0}', space=vmem, size = 0x2000, scoped, tag = 'output window, operand 0, single buffered']
    %10 = vsyncpa [#allocation3], 0
    %11 = vsyncpa [#allocation6], 0
    %12 = vsyncpa [#allocation4], 0
    // Predicated region
    $region2: #{tpu_custom_call.1} parent=1 // pred_check
      _
    $region3: #{tpu_custom_call.1} parent=1 // pred_check_branch
      %14 = sbr.rel (0) target = $region5
    $region4: #{tpu_custom_call.1} parent=1 // pred_region
      %16 = vsyncadd [#allocation3], 0
      %s17 = sshll.u32 %s0, 4
      %s18 = int_to_ptr.hbm [resolvable:$true] %s17
      %s19 = sshll.u32 [#allocation2], 4
      %s20 = int_to_ptr.vmem [resolvable:$true] %s19
      %25 = dma.hbm_to_vmem [thread:$0]  %s18, 256, %s20, [#allocation3], 128, 128, 8
    $region5: #{tpu_custom_call.1} parent=1 // pred_fallthru
      _
    // Predicated region
    $region6: #{tpu_custom_call.1} parent=1 // pred_check
      _
    $region7: #{tpu_custom_call.1} parent=1 // pred_check_branch
      %27 = sbr.rel (0) target = $region9
    $region8: #{tpu_custom_call.1} parent=1 // pred_region
      %29 = vsyncadd [#allocation6], 0
      %s30 = sshll.u32 %s1, 4
      %s31 = int_to_ptr.hbm [resolvable:$true] %s30
      %s32 = sshll.u32 [#allocation5], 4
      %s33 = int_to_ptr.vmem [resolvable:$true] %s32
      %38 = dma.hbm_to_vmem [thread:$0]  %s31, 2048, %s33, [#allocation6], 128, 128, 8
    $region9: #{tpu_custom_call.1} parent=1 // pred_fallthru
      _
    // Predicated region
    $region10: #{tpu_custom_call.1} parent=1 // pred_check
      _
    $region11: #{tpu_custom_call.1} parent=1 // pred_check_branch
      %40 = sbr.rel (0) target = $region13
    $region12: #{tpu_custom_call.1} parent=1 // pred_region
      _
    $region13: #{tpu_custom_call.1} parent=1 // pred_fallthru
      _
    // Predicated region
    $region14: #{tpu_custom_call.1} parent=1 // pred_check
      _
    $region15: #{tpu_custom_call.1} parent=1 // pred_check_branch
      %42 = sbr.rel (0) target = $region17
    $region16: #{tpu_custom_call.1} parent=1 // pred_region
      %44 = vsyncadd [#allocation6], 0
      %s45 = sshll.u32 %s3, 4
      %s46 = int_to_ptr.hbm [resolvable:$true] %s45
      %s47 = sshll.u32 [#allocation7], 4
      %s48 = int_to_ptr.vmem [resolvable:$true] %s47
      %53 = dma.hbm_to_vmem [thread:$0]  %s46, 2048, %s48, [#allocation6], 128, 128, 8
    $region17: #{tpu_custom_call.1} parent=1 // pred_fallthru
      _
    // Predicated region
    $region18: #{tpu_custom_call.1} parent=1 // pred_check
      _
    $region19: #{tpu_custom_call.1} parent=1 // pred_check_branch
      %55 = sbr.rel (0) target = $region21
    $region20: #{tpu_custom_call.1} parent=1 // pred_region
      _
    $region21: #{tpu_custom_call.1} parent=1 // pred_fallthru
      _
    // Predicated region
    $region22: #{tpu_custom_call.1} parent=1 // pred_check
      _
    $region23: #{tpu_custom_call.1} parent=1 // pred_check_branch
      %57 = sbr.rel (0) target = $region25
    $region24: #{tpu_custom_call.1} parent=1 // pred_region
      %59 = dma.done [#allocation3], 256
    $region25: #{tpu_custom_call.1} parent=1 // pred_fallthru
      _
    // Predicated region
    $region26: #{tpu_custom_call.1} parent=1 // pred_check
      _
    $region27: #{tpu_custom_call.1} parent=1 // pred_check_branch
      %61 = sbr.rel (0) target = $region29
    $region28: #{tpu_custom_call.1} parent=1 // pred_region
      %63 = dma.done [#allocation6], 2048
    $region29: #{tpu_custom_call.1} parent=1 // pred_fallthru
      _
    // Predicated region
    $region30: #{tpu_custom_call.1} parent=1 // pred_check
      _
    $region31: #{tpu_custom_call.1} parent=1 // pred_check_branch
      %65 = sbr.rel (0) target = $region33
    $region32: #{tpu_custom_call.1} parent=1 // pred_region
      %67 = dma.done [#allocation6], 2048
    $region33: #{tpu_custom_call.1} parent=1 // pred_fallthru
      _
    %v68 = vld [vmem:[#allocation2] sm:$0xff]
    %v69 = vld [vmem:[#allocation2 + $0x8] sm:$0xff]
    %v70 = vld [vmem:[#allocation5] sm:$0xff]
    %v71 = vld [vmem:[#allocation5 + $0x8] sm:$0xff]
    %v72 = vld [vmem:[#allocation5 + $0x10] sm:$0xff]
    %v73 = vld [vmem:[#allocation5 + $0x18] sm:$0xff]
    %v74 = vld [vmem:[#allocation5 + $0x20] sm:$0xff]
    %v75 = vld [vmem:[#allocation5 + $0x28] sm:$0xff]
    %v76 = vld [vmem:[#allocation5 + $0x30] sm:$0xff]
    %v77 = vld [vmem:[#allocation5 + $0x38] sm:$0xff]
    %v78 = vld [vmem:[#allocation5 + $0x40] sm:$0xff]
    %v79 = vld [vmem:[#allocation5 + $0x48] sm:$0xff]
    %v80 = vld [vmem:[#allocation5 + $0x50] sm:$0xff]
    %v81 = vld [vmem:[#allocation5 + $0x58] sm:$0xff]
    %v82 = vld [vmem:[#allocation5 + $0x60] sm:$0xff]
    %v83 = vld [vmem:[#allocation5 + $0x68] sm:$0xff]
    %v84 = vld [vmem:[#allocation5 + $0x70] sm:$0xff]
    %v85 = vld [vmem:[#allocation5 + $0x78] sm:$0xff]
    %v86 = vld [vmem:[%s2] sm:$0x1]
    %v88 = vperm.slane %v86, 0
    %90 = vmatpush.msra.mxu0 %v85
    %91 = vmatpush.msra.mxu0 %v84
    %92 = vmatpush.msra.mxu0 %v83
    %93 = vmatpush.msra.mxu0 %v82
    %94 = vmatpush.msra.mxu0 %v81
    %95 = vmatpush.msra.mxu0 %v80
    %96 = vmatpush.msra.mxu0 %v79
    %97 = vmatpush.msra.mxu0 %v78
    %98 = vmatpush.msra.mxu0 %v77
    %99 = vmatpush.msra.mxu0 %v76
    %100 = vmatpush.msra.mxu0 %v75
    %101 = vmatpush.msra.mxu0 %v74
    %102 = vmatpush.msra.mxu0 %v73
    %103 = vmatpush.msra.mxu0 %v72
    %104 = vmatpush.msra.mxu0 %v71
    %105 = vmatpush.msra.mxu0 %v70
    %106 = vmatmul.f32.gmra.mxu0 %v68
    %v107 = vpop.f32.mrf.mxu0
    %v108 = vadd.f32 %v88, %v107
    %109 = vmatmul.f32.gmra.mxu0 %v69
    %v110 = vpop.f32.mrf.mxu0
    %v111 = vadd.f32 %v88, %v110
    %112 = vdwg.mxu0
    %v113 = vmax.f32 %v108, 0.0
    %v114 = vmax.f32 %v111, 0.0
    %v115 = vld [vmem:[#allocation7] sm:$0xff]
    %v116 = vld [vmem:[#allocation7 + $0x8] sm:$0xff]
    %v117 = vld [vmem:[#allocation7 + $0x10] sm:$0xff]
    %v118 = vld [vmem:[#allocation7 + $0x18] sm:$0xff]
    %v119 = vld [vmem:[#allocation7 + $0x20] sm:$0xff]
    %v120 = vld [vmem:[#allocation7 + $0x28] sm:$0xff]
    %v121 = vld [vmem:[#allocation7 + $0x30] sm:$0xff]
    %v122 = vld [vmem:[#allocation7 + $0x38] sm:$0xff]
    %v123 = vld [vmem:[#allocation7 + $0x40] sm:$0xff]
    %v124 = vld [vmem:[#allocation7 + $0x48] sm:$0xff]
    %v125 = vld [vmem:[#allocation7 + $0x50] sm:$0xff]
    %v126 = vld [vmem:[#allocation7 + $0x58] sm:$0xff]
    %v127 = vld [vmem:[#allocation7 + $0x60] sm:$0xff]
    %v128 = vld [vmem:[#allocation7 + $0x68] sm:$0xff]
    %v129 = vld [vmem:[#allocation7 + $0x70] sm:$0xff]
    %v130 = vld [vmem:[#allocation7 + $0x78] sm:$0xff]
    %v131 = vld [vmem:[%s4] sm:$0x1]
    %v133 = vperm.slane %v131, 0
    %135 = vmatpush.msra.mxu0 %v130
    %136 = vmatpush.msra.mxu0 %v129
    %137 = vmatpush.msra.mxu0 %v128
    %138 = vmatpush.msra.mxu0 %v127
    %139 = vmatpush.msra.mxu0 %v126
    %140 = vmatpush.msra.mxu0 %v125
    %141 = vmatpush.msra.mxu0 %v124
    %142 = vmatpush.msra.mxu0 %v123
    %143 = vmatpush.msra.mxu0 %v122
    %144 = vmatpush.msra.mxu0 %v121
    %145 = vmatpush.msra.mxu0 %v120
    %146 = vmatpush.msra.mxu0 %v119
    %147 = vmatpush.msra.mxu0 %v118
    %148 = vmatpush.msra.mxu0 %v117
    %149 = vmatpush.msra.mxu0 %v116
    %150 = vmatpush.msra.mxu0 %v115
    %151 = vmatmul.f32.gmra.mxu0 %v113
    %v152 = vpop.f32.mrf.mxu0
    %v153 = vadd.f32 %v133, %v152
    %154 = vmatmul.f32.gmra.mxu0 %v114
    %v155 = vpop.f32.mrf.mxu0
    %v156 = vadd.f32 %v133, %v155
    %157 = vdwg.mxu0
    %158 = vst [vmem:[#allocation8] sm:$0xff] %v153
    %159 = vst [vmem:[#allocation8 + $0x8] sm:$0xff] %v156
    // Predicated region
    $region34: #{tpu_custom_call.1} parent=1 // pred_check
      _
    $region35: #{tpu_custom_call.1} parent=1 // pred_check_branch
      %161 = sbr.rel (0) target = $region37
    $region36: #{tpu_custom_call.1} parent=1 // pred_region
      %163 = vsyncadd [#allocation4], 0
      %s164 = sshll.u32 [#allocation8], 4
      %s165 = int_to_ptr.vmem [resolvable:$true] %s164
      %s166 = sshll.u32 %s5, 4
      %s167 = int_to_ptr.hbm [resolvable:$true] %s166
      %172 = dma.vmem_to_hbm [thread:$0]  %s165, 256, %s167, [#allocation4], 128, 128, 8
    $region37: #{tpu_custom_call.1} parent=1 // pred_fallthru
      _
    // Predicated region
    $region38: #{tpu_custom_call.1} parent=1 // pred_check
      _
    $region39: #{tpu_custom_call.1} parent=1 // pred_check_branch
      %174 = sbr.rel (0) target = $region41
    $region40: #{tpu_custom_call.1} parent=1 // pred_region
      %176 = dma.done [#allocation4], 256
    $region41: #{tpu_custom_call.1} parent=1 // pred_fallthru
      _
    %177 = vsyncpa [#allocation3], 1
    %178 = vsyncpa [#allocation6], 1
    %179 = vsyncpa [#allocation4], 1

</llo_original>
